<compile_context>
chip_gen: v5e
topology: v5e:2x2
jax: 0.10.0
libtpu: 0.0.40
codegen_flags: <defaults>
</compile_context>

<pallas_src>
import math
import functools

import jax
import jax.numpy as jnp
from jax.experimental import pallas as pl
from jax.experimental.pallas import tpu as pltpu

_BN_EPS = 1e-5
# BatchNorm at init: gamma=1, beta=0, running_mean=0, running_var=1 -> y = x / sqrt(1+eps)
_BN_SCALE = 1.0 / math.sqrt(1.0 + _BN_EPS)
_ACT_DTYPE = jnp.bfloat16   # inter-layer activation storage dtype (halves HBM traffic)
_LANE = 128                 # lane-dense output channel padding (unmasked vst)

_VMEM_LIMIT = 48 * 1024 * 1024        # scoped VMEM request (safe w.r.t. v7x 64 MiB physical)
_CONV_VMEM_BUDGET = 24 * 1024 * 1024  # per-grid-step working-set budget for the conv kernel
_MM_VMEM_BUDGET = 24 * 1024 * 1024
_MM_TM_MAX = 1024                     # large blocks amortize per-step overhead (v5e/v6e)


def _round_up(v, m):
    return -(-v // m) * m


# ----------------------------------------------------------------------------------
# Pallas kernel 1: fused matmul  out = maybe_relu(A @ W [+ shift])
#   A/W bf16 on the MXU, accumulate + epilogue in f32, cast on store.
# ----------------------------------------------------------------------------------
def _mm_kernel(*refs, relu, has_bias):
    if has_bias:
        a_ref, w_ref, b_ref, o_ref = refs
    else:
        a_ref, w_ref, o_ref = refs
        b_ref = None
    y = jnp.dot(a_ref[...], w_ref[...], preferred_element_type=jnp.float32)
    if has_bias:
        y = y + b_ref[...]
    if relu:
        y = jnp.maximum(y, 0.0)
    o_ref[...] = y.astype(o_ref.dtype)


def fused_matmul(a, w, shift, n_out, relu, out_dtype=_ACT_DTYPE):
    """a: (M, K), w: (K, Np) bf16 with Np % 128 == 0 (BN scale pre-folded),
    shift: (1, Np) f32 or None.  Returns (M, n_out) in out_dtype."""
    M, K = a.shape
    Kw, Np = w.shape
    assert K == Kw, (K, Kw)
    a16 = a.astype(jnp.bfloat16)
    out_itemsize = jnp.dtype(out_dtype).itemsize

    if M <= 256:
        tm = M                      # single block; full-dim blocks need no (8,128) padding
    else:
        # at least two M blocks so the "parallel" axis can shard across v7x's 2 TCs,
        # bounded by a per-step VMEM budget (A/out double-buffered, W resident).
        tm_cap = (_MM_VMEM_BUDGET - 4 * K * Np) // max(1, 4 * K + (2 * out_itemsize + 4) * Np)
        tm_cap = max(128, tm_cap)
        tm = min(_MM_TM_MAX, _round_up(pl.cdiv(M, 2), 8), _round_up(tm_cap, 8))
        tm = max(8, min(tm, M))
    grid_m = pl.cdiv(M, tm)

    has_bias = shift is not None
    in_specs = [pl.BlockSpec((tm, K), lambda i: (i, 0)),    # A tile, full K
                pl.BlockSpec((K, Np), lambda i: (0, 0))]    # whole folded weight (resident)
    args = [a16, w]
    if has_bias:
        in_specs.append(pl.BlockSpec((1, Np), lambda i: (0, 0)))
        args.append(shift)

    out = pl.pallas_call(
        functools.partial(_mm_kernel, relu=relu, has_bias=has_bias),
        out_shape=jax.ShapeDtypeStruct((M, Np), out_dtype),
        grid_spec=pltpu.PrefetchScalarGridSpec(
            num_scalar_prefetch=0,
            grid=(grid_m,),
            in_specs=in_specs,
            out_specs=pl.BlockSpec((tm, Np), lambda i: (i, 0)),
        ),
        compiler_params=pltpu.CompilerParams(
            dimension_semantics=("parallel",),
            vmem_limit_bytes=_VMEM_LIMIT),
        cost_estimate=pl.CostEstimate(
            flops=int(2 * M * K * Np),
            transcendentals=0,
            bytes_accessed=int(M * K * 2 + K * Np * 2 + M * Np * out_itemsize)),
    )(*args)

    if n_out != Np:
        out = out[:, :n_out]
    return out


# ----------------------------------------------------------------------------------
# Pallas kernel 2: conv with in-kernel im2col.
#   Grid over batch; the whole padded image (1, Hp, Wp, Cin) stays in VMEM and the
#   kh*kw shifted windows are extracted with static ref slices (no HBM patches).
# ----------------------------------------------------------------------------------
def _conv_kernel(*refs, kh, kw, cin, ho, wo, relu, has_bias):
    if has_bias:
        x_ref, w_ref, b_ref, o_ref = refs
    else:
        x_ref, w_ref, o_ref = refs
        b_ref = None
    np_ = o_ref.shape[-1]
    acc = jnp.zeros((ho * wo, np_), jnp.float32)
    for ky in range(kh):
        for kx in range(kw):
            a = x_ref[0, ky:ky + ho, kx:kx + wo, :]        # (ho, wo, cin) halo window
            a = a.reshape(ho * wo, cin)                    # trivial relayout: wo % 8 == 0
            wk = w_ref[(ky * kw + kx) * cin:(ky * kw + kx + 1) * cin, :]
            acc = acc + jnp.dot(a, wk, preferred_element_type=jnp.float32)
    if has_bias:
        acc = acc + b_ref[...]
    if relu:
        acc = jnp.maximum(acc, 0.0)
    o_ref[0] = acc.astype(o_ref.dtype)


def conv2d_pallas(xp, w, shift, n_out, kh, kw, relu, out_dtype=_ACT_DTYPE):
    """xp: (N, Hp, Wp, cin) bf16, already spatially padded (stride handled via
    space-to-depth by the caller); w: (kh*kw*cin, Np) bf16 (BN folded)."""
    N, Hp, Wp, cin = xp.shape
    K, Np = w.shape
    assert K == kh * kw * cin, (K, kh, kw, cin)
    ho, wo = Hp - kh + 1, Wp - kw + 1
    has_bias = shift is not None
    out_itemsize = jnp.dtype(out_dtype).itemsize

    in_specs = [pl.BlockSpec((1, Hp, Wp, cin), lambda n: (n, 0, 0, 0)),
                pl.BlockSpec((K, Np), lambda n: (0, 0))]
    args = [xp, w]
    if has_bias:
        in_specs.append(pl.BlockSpec((1, Np), lambda n: (0, 0)))
        args.append(shift)

    out = pl.pallas_call(
        functools.partial(_conv_kernel, kh=kh, kw=kw, cin=cin, ho=ho, wo=wo,
                          relu=relu, has_bias=has_bias),
        out_shape=jax.ShapeDtypeStruct((N, ho * wo, Np), out_dtype),
        grid_spec=pltpu.PrefetchScalarGridSpec(
            num_scalar_prefetch=0,
            grid=(N,),
            in_specs=in_specs,
            out_specs=pl.BlockSpec((1, ho * wo, Np), lambda n: (n, 0, 0)),
        ),
        compiler_params=pltpu.CompilerParams(
            dimension_semantics=("parallel",),
            vmem_limit_bytes=_VMEM_LIMIT),
        cost_estimate=pl.CostEstimate(
            flops=int(2 * N * ho * wo * K * Np),
            transcendentals=0,
            bytes_accessed=int(N * Hp * Wp * cin * 2 + K * Np * 2
                               + N * ho * wo * Np * out_itemsize)),
    )(*args)

    out = out.reshape(N, ho, wo, Np)
    if n_out != Np:
        out = out[..., :n_out]
    return out


def _conv_kernel_fits(Hp, Wp, cin, K, Np, ho, wo, out_dtype):
    """Conservative per-grid-step VMEM estimate (layout-padded, double-buffered)."""
    lane = lambda c: _round_up(max(c, 1), 128)
    sub = lambda s: _round_up(max(s, 1), 8)
    x_b = Hp * sub(Wp) * lane(cin) * 2
    w_b = sub(K) * Np * 2
    o_b = sub(ho * wo) * Np * jnp.dtype(out_dtype).itemsize
    acc_b = sub(ho * wo) * Np * 4
    tap_b = sub(ho * wo) * lane(cin) * 2
    return (2 * x_b + 2 * w_b + 2 * o_b + acc_b + 2 * tap_b) <= _CONV_VMEM_BUDGET


def _space_to_depth2(xp):
    """(N, Hp, Wp, C) with even Hp, Wp -> (N, Hp/2, Wp/2, 4C); channel order (b, d, c)."""
    N, Hp, Wp, C = xp.shape
    x = xp.reshape(N, Hp // 2, 2, Wp // 2, 2, C)
    x = jnp.transpose(x, (0, 1, 3, 2, 4, 5))
    return x.reshape(N, Hp // 2, Wp // 2, 4 * C)


# ----------------------------------------------------------------------------------
# Fallback im2col glue (only for tiny / odd spatial sizes, e.g. classifier 4x4 / 2x2)
# ----------------------------------------------------------------------------------
def _im2col(x, kh, kw, stride, padding):
    N, H, W, Cin = x.shape
    Ho = (H + 2 * padding - kh) // stride + 1
    Wo = (W + 2 * padding - kw) // stride + 1
    if padding:
        x = jnp.pad(x, ((0, 0), (padding, padding), (padding, padding), (0, 0)))
    cols = [x[:, ky:ky + (Ho - 1) * stride + 1:stride,
              kx:kx + (Wo - 1) * stride + 1:stride, :]
            for ky in range(kh) for kx in range(kw)]
    patches = cols[0] if len(cols) == 1 else jnp.concatenate(cols, axis=-1)
    return patches.reshape(N * Ho * Wo, kh * kw * Cin), (N, Ho, Wo)


def maxpool2d(x, k=3, stride=2, padding=1):
    N, H, W, C = x.shape
    Ho = (H + 2 * padding - k) // stride + 1
    Wo = (W + 2 * padding - k) // stride + 1
    xp = jnp.pad(x, ((0, 0), (padding, padding), (padding, padding), (0, 0)),
                 constant_values=-jnp.inf)
    out = jnp.full((N, Ho, Wo, C), -jnp.inf, x.dtype)
    for ky in range(k):
        for kx in range(k):
            out = jnp.maximum(out, xp[:, ky:ky + (Ho - 1) * stride + 1:stride,
                                      kx:kx + (Wo - 1) * stride + 1:stride, :])
    return out


def avgpool2(x):
    N, H, W, C = x.shape
    Ho, Wo = H // 2, W // 2
    x = x[:, :Ho * 2, :Wo * 2, :].reshape(N, Ho, 2, Wo, 2, C)
    return x.mean(axis=(2, 4))


# ----------------------------------------------------------------------------------
# Shared conv forward: path selection (in-kernel im2col / s2d / 1x1 matmul / fallback)
# ----------------------------------------------------------------------------------
def conv_bn_relu_forward(x, kernel, stride, padding, w_mat, w_s2d, n_out,
                         shift=None, relu=True, out_dtype=_ACT_DTYPE,
                         allow_conv_kernel=True):
    x = x.astype(_ACT_DTYPE)
    N, H, W, Cin = x.shape
    Np = w_mat.shape[1]

    if kernel == 1 and stride == 1 and padding == 0:
        # 1x1 conv is a plain pixel matmul: zero im2col amplification.
        o = fused_matmul(x.reshape(N * H * W, Cin), w_mat, shift, n_out, relu, out_dtype)
        return o.reshape(N, H, W, n_out)

    Ho = (H + 2 * padding - kernel) // stride + 1
    Wo = (W + 2 * padding - kernel) // stride + 1
    Hp_full, Wp_full = H + 2 * padding, W + 2 * padding

    use_conv = allow_conv_kernel and (Wo % 8 == 0) and Ho >= 1
    kh_eff = hp = wp = cin_eff = None
    w_use = None
    if stride == 1:
        kh_eff, hp, wp, cin_eff, w_use = kernel, Hp_full, Wp_full, Cin, w_mat
    elif stride == 2 and w_s2d is not None and Hp_full % 2 == 0 and Wp_full % 2 == 0:
        kh_eff = (kernel + 1) // 2
        hp, wp, cin_eff, w_use = Hp_full // 2, Wp_full // 2, 4 * Cin, w_s2d
    else:
        use_conv = False
    if use_conv:
        use_conv = _conv_kernel_fits(hp, wp, cin_eff, w_use.shape[0], Np, Ho, Wo, out_dtype)

    if use_conv:
        xp = x
        if padding:
            xp = jnp.pad(xp, ((0, 0), (padding, padding), (padding, padding), (0, 0)))
        if stride == 2:
            xp = _space_to_depth2(xp)     # 1x traffic; stride-2 conv -> stride-1 conv
        return conv2d_pallas(xp, w_use, shift, n_out, kh_eff, kh_eff, relu, out_dtype)

    # Fallback: XLA im2col glue + fused matmul (only tiny / odd spatial sizes).
    a, (n, ho, wo) = _im2col(x, kernel, kernel, stride, padding)
    o = fused_matmul(a, w_mat, shift, n_out, relu, out_dtype)
    return o.reshape(n, ho, wo, n_out)


# ----------------------------------------------------------------------------------
# Deterministic parameter generation
# ----------------------------------------------------------------------------------
class KeyGen:
    def __init__(self, seed):
        self._key = jax.random.PRNGKey(seed)
        self._i = 0

    def next(self):
        self._i += 1
        return jax.random.fold_in(self._key, self._i)


def _conv_weight(kg, kh, kw, cin, cout):
    # PyTorch MSDNet _init_weights: N(0, sqrt(2 / (kh*kw*cout)))
    n = kh * kw * cout
    return jax.random.normal(kg.next(), (kh, kw, cin, cout), jnp.float32) * math.sqrt(2.0 / n)


def _fold_conv_weight(w, scale=_BN_SCALE):
    """(kh,kw,cin,cout) f32 -> (kh*kw*cin, Np) bf16 with BN scale folded (im2col order)."""
    kh, kw, cin, cout = w.shape
    np_ = _round_up(cout, _LANE)
    wm = (w.reshape(kh * kw * cin, cout) * scale).astype(jnp.bfloat16)
    if np_ != cout:
        wm = jnp.pad(wm, ((0, 0), (0, np_ - cout)))
    return wm


def _fold_conv_weight_s2d(w, scale=_BN_SCALE):
    """Stride-2 conv weight re-laid-out for the space-to-depth stride-1 formulation."""
    kh, kw, cin, cout = w.shape
    khe, kwe = (kh + 1) // 2, (kw + 1) // 2
    w_eff = jnp.zeros((khe, kwe, 2, 2, cin, cout), jnp.float32)
    for ky in range(kh):
        for kx in range(kw):
            w_eff = w_eff.at[ky // 2, kx // 2, ky % 2, kx % 2].set(w[ky, kx])
    np_ = _round_up(cout, _LANE)
    wm = (w_eff.reshape(khe * kwe * 4 * cin, cout) * scale).astype(jnp.bfloat16)
    if np_ != cout:
        wm = jnp.pad(wm, ((0, 0), (0, np_ - cout)))
    return wm


# ----------------------------------------------------------------------------------
# Model building blocks (mirror the PyTorch modules)
# ----------------------------------------------------------------------------------
class ConvBNReLU:
    """Conv2d(bias=False) + BatchNorm2d + ReLU == ConvBasic (BN scale folded into W)."""

    def __init__(self, kg, nIn, nOut, kernel=3, stride=1, padding=1):
        self.kernel, self.stride, self.padding = kernel, stride, padding
        self.n_out = nOut
        w = _conv_weight(kg, kernel, kernel, nIn, nOut)
        self.w = _fold_conv_weight(w)
        self.w_s2d = _fold_conv_weight_s2d(w) if stride == 2 else None

    def __call__(self, x, allow_conv_kernel=True):
        return conv_bn_relu_forward(x, self.kernel, self.stride, self.padding,
                                    self.w, self.w_s2d, self.n_out,
                                    shift=None, relu=True,
                                    allow_conv_kernel=allow_conv_kernel)


class ImagenetStem:
    """Conv2d(7,2,3, bias=True) + BN + ReLU + MaxPool(3,2,1) (imagenet first layer)."""

    def __init__(self, kg, nIn, nOut):
        self.n_out = nOut
        w = _conv_weight(kg, 7, 7, nIn, nOut)
        self.w = _fold_conv_weight(w)
        self.w_s2d = _fold_conv_weight_s2d(w)
        np_ = self.w.shape[1]
        bound = 1.0 / math.sqrt(nIn * 49)
        bias = jax.random.uniform(kg.next(), (nOut,), jnp.float32, -bound, bound)
        # conv bias folded through the (inference-mode) BN affine
        self.shift = jnp.zeros((1, np_), jnp.float32).at[0, :nOut].set(bias * _BN_SCALE)

    def __call__(self, x):
        y = conv_bn_relu_forward(x, 7, 2, 3, self.w, self.w_s2d, self.n_out,
                                 shift=self.shift, relu=True)
        return maxpool2d(y, 3, 2, 1)


class ConvBN:
    """MSDNet ConvBN: optional 1x1 bottleneck (conv+BN+ReLU) then 3x3 conv (s1/s2)+BN+ReLU."""

    def __init__(self, kg, nIn, nOut, type_, bottleneck, bnWidth):
        self.ops = []
        nInner = nIn
        if bottleneck:
            nInner = min(nInner, bnWidth * nOut)
            self.ops.append(ConvBNReLU(kg, nIn, nInner, kernel=1, stride=1, padding=0))
        stride = 1 if type_ == 'normal' else 2
        self.ops.append(ConvBNReLU(kg, nInner, nOut, kernel=3, stride=stride, padding=1))

    def __call__(self, x):
        for op in self.ops:
            x = op(x)
        return x


class ConvDownNormal:
    def __init__(self, kg, nIn1, nIn2, nOut, bottleneck, bnWidth1, bnWidth2):
        self.conv_down = ConvBN(kg, nIn1, nOut // 2, 'down', bottleneck, bnWidth1)
        self.conv_normal = ConvBN(kg, nIn2, nOut // 2, 'normal', bottleneck, bnWidth2)

    def __call__(self, x):
        return jnp.concatenate(
            [x[1].astype(_ACT_DTYPE), self.conv_down(x[0]), self.conv_normal(x[1])], axis=-1)


class ConvNormal:
    def __init__(self, kg, nIn, nOut, bottleneck, bnWidth):
        self.conv_normal = ConvBN(kg, nIn, nOut, 'normal', bottleneck, bnWidth)

    def __call__(self, x):
        if not isinstance(x, list):
            x = [x]
        return jnp.concatenate(
            [x[0].astype(_ACT_DTYPE), self.conv_normal(x[0])], axis=-1)


class MSDNFirstLayer:
    def __init__(self, kg, nIn, nOut, dataname, grFactor, nScales):
        self.layers = []
        if dataname.startswith('cifar'):
            self.layers.append(ConvBNReLU(kg, nIn, nOut * grFactor[0], 3, 1, 1))
        elif dataname.startswith('imagenet'):
            self.layers.append(ImagenetStem(kg, nIn, nOut * grFactor[0]))
        nIn = nOut * grFactor[0]
        for i in range(1, nScales):
            self.layers.append(ConvBNReLU(kg, nIn, nOut * grFactor[i], 3, 2, 1))
            nIn = nOut * grFactor[i]

    def __call__(self, x):
        res = []
        for layer in self.layers:
            x = layer(x)
            res.append(x)
        return res


class MSDNLayer:
    def __init__(self, kg, nIn, nOut, nScales, grFactor, bottleneck, bnFactor,
                 inScales=None, outScales=None):
        self.inScales = inScales if inScales is not None else nScales
        self.outScales = outScales if outScales is not None else nScales
        self.discard = self.inScales - self.outScales
        self.offset = nScales - self.outScales
        self.layers = []
        if self.discard > 0:
            nIn1 = nIn * grFactor[self.offset - 1]
            nIn2 = nIn * grFactor[self.offset]
            _nOut = nOut * grFactor[self.offset]
            self.layers.append(ConvDownNormal(kg, nIn1, nIn2, _nOut, bottleneck,
                                              bnFactor[self.offset - 1], bnFactor[self.offset]))
        else:
            self.layers.append(ConvNormal(kg, nIn * grFactor[self.offset],
                                          nOut * grFactor[self.offset],
                                          bottleneck, bnFactor[self.offset]))
        for i in range(self.offset + 1, nScales):
            self.layers.append(ConvDownNormal(kg, nIn * grFactor[i - 1], nIn * grFactor[i],
                                              nOut * grFactor[i], bottleneck,
                                              bnFactor[i - 1], bnFactor[i]))

    def __call__(self, x):
        if self.discard > 0:
            inp = [[x[i - 1], x[i]] for i in range(1, self.outScales + 1)]
        else:
            inp = [[x[0]]] + [[x[i - 1], x[i]] for i in range(1, self.outScales)]
        return [self.layers[i](inp[i]) for i in range(self.outScales)]


class ParallelModule:
    def __init__(self, modules):
        self.m = modules

    def __call__(self, x):
        return [self.m[i](x[i]) for i in range(len(x))]


class ClassifierModule:
    def __init__(self, kg, convs, channel, num_classes):
        self.convs = convs
        self.channel = channel
        self.num_classes = num_classes
        np_ = _round_up(num_classes, _LANE)
        bound = 1.0 / math.sqrt(channel)          # PyTorch default Linear weight init
        lw = jax.random.uniform(kg.next(), (channel, num_classes), jnp.float32, -bound, bound)
        self.lw = jnp.zeros((channel, np_), jnp.bfloat16).at[:, :num_classes].set(
            lw.astype(jnp.bfloat16))

    def __call__(self, x):
        r = x[-1]
        for c in self.convs:
            r = c(r)
        r = avgpool2(r)
        n = r.shape[0]
        r = jnp.transpose(r, (0, 3, 1, 2)).reshape(n, -1)   # flatten in NCHW order like PyTorch
        # Linear bias is zeroed by PyTorch _init_weights -> no bias input at all.
        return fused_matmul(r, self.lw, None, self.num_classes, relu=False,
                            out_dtype=jnp.float32)


# ----------------------------------------------------------------------------------
# MSDNet
# ----------------------------------------------------------------------------------
class MSDNet:
    def __init__(self, kg, reduction=0.5, nBlocks=1, nChannels=32, base=4, stepmode='even',
                 step=1, growthRate=6, grFactor=(1, 2, 4), prune='max', bnFactor=(1, 2, 4),
                 bottleneck=True, dataname='imagenet', num_classes=1000, exit_num=None):
        self.reduction = reduction
        self.nBlocks = nBlocks
        self.growthRate = growthRate
        self.grFactor = list(grFactor)
        self.prune = prune
        self.bnFactor = list(bnFactor)
        self.bottleneck = bottleneck
        self.dataname = dataname
        self.nScales = len(self.grFactor)
        self.exit_num = exit_num if exit_num is not None else nBlocks

        self.steps = [base]
        n_layers_all, n_layer_curr = base, 0
        for i in range(1, nBlocks):
            self.steps.append(step if stepmode == 'even' else step * i + 1)
            n_layers_all += self.steps[-1]

        self.blocks = []
        self.classifier = []
        nIn = nChannels
        for i in range(nBlocks):
            block, nIn = self._build_block(kg, nIn, self.steps[i], n_layers_all, n_layer_curr)
            self.blocks.append(block)
            n_layer_curr += self.steps[i]
            c_in = nIn * self.grFactor[-1]
            if dataname.startswith('cifar100'):
                self.classifier.append(self._build_classifier_cifar(kg, c_in, 100))
            elif dataname.startswith('cifar10'):
                self.classifier.append(self._build_classifier_cifar(kg, c_in, 10))
            elif dataname == 'imagenet':
                self.classifier.append(self._build_classifier_imagenet(kg, c_in, 1000))
            elif dataname == 'imagenet200':
                self.classifier.append(self._build_classifier_imagenet(kg, c_in, 200))
            else:
                self.classifier.append(self._build_classifier_imagenet(kg, c_in, num_classes))

    def _build_block(self, kg, nIn, step, n_layer_all, n_layer_curr):
        layers = [MSDNFirstLayer(kg, 3, nIn, self.dataname, self.grFactor, self.nScales)] \
            if n_layer_curr == 0 else []
        for _ in range(step):
            n_layer_curr += 1
            if self.prune == 'min':
                inScales = min(self.nScales, n_layer_all - n_layer_curr + 2)
                outScales = min(self.nScales, n_layer_all - n_layer_curr + 1)
            elif self.prune == 'max':
                interval = math.ceil(1.0 * n_layer_all / self.nScales)
                inScales = self.nScales - math.floor(1.0 * max(0, n_layer_curr - 2) / interval)
                outScales = self.nScales - math.floor(1.0 * (n_layer_curr - 1) / interval)
            else:
                raise ValueError
            layers.append(MSDNLayer(kg, nIn, self.growthRate, self.nScales, self.grFactor,
                                    self.bottleneck, self.bnFactor, inScales, outScales))
            nIn += self.growthRate
            if self.prune == 'max' and inScales > outScales and self.reduction > 0:
                offset = self.nScales - outScales
                layers.append(self._build_transition(kg, nIn, math.floor(1.0 * self.reduction * nIn),
                                                     outScales, offset))
                nIn = math.floor(1.0 * self.reduction * nIn)
            elif self.prune == 'min' and self.reduction > 0 and \
                    (n_layer_curr == math.floor(1.0 * n_layer_all / 3) or
                     n_layer_curr == math.floor(2.0 * n_layer_all / 3)):
                offset = self.nScales - outScales
                layers.append(self._build_transition(kg, nIn, math.floor(1.0 * self.reduction * nIn),
                                                     outScales, offset))
                nIn = math.floor(1.0 * self.reduction * nIn)
        return layers, nIn

    def _build_transition(self, kg, nIn, nOut, outScales, offset):
        return ParallelModule([
            ConvBNReLU(kg, nIn * self.grFactor[offset + i], nOut * self.grFactor[offset + i],
                       kernel=1, stride=1, padding=0)
            for i in range(outScales)])

    def _build_classifier_cifar(self, kg, nIn, num_classes):
        inter1, inter2 = 128, 128
        convs = [ConvBNReLU(kg, nIn, inter1, 3, 2, 1), ConvBNReLU(kg, inter1, inter2, 3, 2, 1)]
        return ClassifierModule(kg, convs, inter2, num_classes)

    def _build_classifier_imagenet(self, kg, nIn, num_classes):
        convs = [ConvBNReLU(kg, nIn, nIn, 3, 2, 1), ConvBNReLU(kg, nIn, nIn, 3, 2, 1)]
        return ClassifierModule(kg, convs, nIn, num_classes)

    def __call__(self, x):
        res = {}
        for i in range(self.nBlocks):
            for layer in self.blocks[i]:
                x = layer(x)
            res[f'head{i + 1}'] = self.classifier[i](x)
            if i == self.exit_num - 1:
                return res
        return res


# ----------------------------------------------------------------------------------
if __name__ == "__main__":
    # Small cifar10-style MSDNet (same architectural logic, reduced widths).
    kg = KeyGen(1234)
    model = MSDNet(kg, reduction=0.5, nBlocks=1, nChannels=8, base=4, stepmode='even', step=1,
                   growthRate=4, grFactor=[1, 2, 4], prune='max', bnFactor=[1, 2, 4],
                   bottleneck=True, dataname='cifar10')

    # Internal consistency check: in-kernel-im2col conv path vs im2col+matmul fallback.
    xc = jax.random.normal(jax.random.PRNGKey(1), (2, 16, 16, 8), jnp.float32)
    chk_s2 = ConvBNReLU(KeyGen(7), 8, 16, kernel=3, stride=2, padding=1)
    y_fast = jax.jit(lambda v: chk_s2(v))(xc)
    y_ref = jax.jit(lambda v: chk_s2(v, allow_conv_kernel=False))(xc)
    assert bool(jnp.allclose(y_fast.astype(jnp.float32), y_ref.astype(jnp.float32),
                             atol=5e-2, rtol=5e-2)), "stride-2 conv kernel mismatch"
    chk_s1 = ConvBNReLU(KeyGen(9), 8, 16, kernel=3, stride=1, padding=1)
    y_fast1 = jax.jit(lambda v: chk_s1(v))(xc)
    y_ref1 = jax.jit(lambda v: chk_s1(v, allow_conv_kernel=False))(xc)
    assert bool(jnp.allclose(y_fast1.astype(jnp.float32), y_ref1.astype(jnp.float32),
                             atol=5e-2, rtol=5e-2)), "stride-1 conv kernel mismatch"

    # Input: batch=2, 3 channels, 32x32 (NHWC here; NCHW equivalent is (2, 3, 32, 32)).
    x = jax.random.normal(jax.random.PRNGKey(0), (2, 32, 32, 3), jnp.float32)

    fwd = jax.jit(model.__call__)
    out = fwd(x)
    out = jax.block_until_ready(out)
    assert out['head1'].shape == (2, 10) and out['head1'].dtype == jnp.float32
    assert bool(jnp.all(jnp.isfinite(out['head1'])))
    print("KERNEL_OK")
</pallas_src>

<mosaic_0001>
module attributes {stable_mosaic.version = 11 : i64} {
  func.func @_conv_kernel(%arg0: i32, %arg1: memref<1x9x9x32xbf16, #tpu.memory_space<vmem>>, %arg2: memref<128x128xbf16, #tpu.memory_space<vmem>>, %arg3: memref<1x64x128xbf16, #tpu.memory_space<vmem>>) attributes {dimension_semantics = [#tpu.dimension_semantics<parallel>], iteration_bounds = array<i64: 2>, scalar_prefetch = 0 : i64, scratch_operands = 0 : i64, tpu.core_type = #tpu.core_type<tc>, window_params = [{transform_indices = @transform_0, window_bounds = array<i64: 1, 9, 9, 32>}, {pipeline_mode = #tpu.pipeline_mode<synchronous>, transform_indices = @transform_1, window_bounds = array<i64: 128, 128>}, {transform_indices = @transform_2, window_bounds = array<i64: 1, 64, 128>}]} {
    %cst = arith.constant 0.000000e+00 : f32
    %0 = vector.broadcast %cst : f32 to vector<64x128xf32>
    %c0 = arith.constant 0 : index
    %c0_0 = arith.constant 0 : index
    %c0_1 = arith.constant 0 : index
    %c0_2 = arith.constant 0 : index
    %1 = vector.load %arg1[%c0, %c0_0, %c0_1, %c0_2] : memref<1x9x9x32xbf16, #tpu.memory_space<vmem>>, vector<1x8x8x32xbf16>
    %2 = vector.shape_cast %1 : vector<1x8x8x32xbf16> to vector<8x8x32xbf16>
    %3 = vector.shape_cast %2 : vector<8x8x32xbf16> to vector<64x32xbf16>
    %c0_3 = arith.constant 0 : index
    %c0_4 = arith.constant 0 : index
    %4 = vector.load %arg2[%c0_3, %c0_4] : memref<128x128xbf16, #tpu.memory_space<vmem>>, vector<32x128xbf16>
    %cst_5 = arith.constant dense<0.000000e+00> : vector<64x128xf32>
    %5 = tpu.matmul %3, %4, %cst_5 {dimension_numbers = #tpu.dot_dimension_numbers<[1], [0], [0], [1], [0, 0, 1, 1], [], []>} : vector<64x32xbf16>, vector<32x128xbf16>, vector<64x128xf32> -> vector<64x128xf32>
    %6 = arith.addf %0, %5 : vector<64x128xf32>
    %c0_6 = arith.constant 0 : index
    %c0_7 = arith.constant 0 : index
    %c1 = arith.constant 1 : index
    %c0_8 = arith.constant 0 : index
    %7 = vector.load %arg1[%c0_6, %c0_7, %c1, %c0_8] : memref<1x9x9x32xbf16, #tpu.memory_space<vmem>>, vector<1x8x8x32xbf16>
    %8 = vector.shape_cast %7 : vector<1x8x8x32xbf16> to vector<8x8x32xbf16>
    %9 = vector.shape_cast %8 : vector<8x8x32xbf16> to vector<64x32xbf16>
    %c32 = arith.constant 32 : index
    %c0_9 = arith.constant 0 : index
    %10 = vector.load %arg2[%c32, %c0_9] : memref<128x128xbf16, #tpu.memory_space<vmem>>, vector<32x128xbf16>
    %cst_10 = arith.constant dense<0.000000e+00> : vector<64x128xf32>
    %11 = tpu.matmul %9, %10, %cst_10 {dimension_numbers = #tpu.dot_dimension_numbers<[1], [0], [0], [1], [0, 0, 1, 1], [], []>} : vector<64x32xbf16>, vector<32x128xbf16>, vector<64x128xf32> -> vector<64x128xf32>
    %12 = arith.addf %6, %11 : vector<64x128xf32>
    %c0_11 = arith.constant 0 : index
    %c1_12 = arith.constant 1 : index
    %c0_13 = arith.constant 0 : index
    %c0_14 = arith.constant 0 : index
    %13 = vector.load %arg1[%c0_11, %c1_12, %c0_13, %c0_14] : memref<1x9x9x32xbf16, #tpu.memory_space<vmem>>, vector<1x8x8x32xbf16>
    %14 = vector.shape_cast %13 : vector<1x8x8x32xbf16> to vector<8x8x32xbf16>
    %15 = vector.shape_cast %14 : vector<8x8x32xbf16> to vector<64x32xbf16>
    %c64 = arith.constant 64 : index
    %c0_15 = arith.constant 0 : index
    %16 = vector.load %arg2[%c64, %c0_15] : memref<128x128xbf16, #tpu.memory_space<vmem>>, vector<32x128xbf16>
    %cst_16 = arith.constant dense<0.000000e+00> : vector<64x128xf32>
    %17 = tpu.matmul %15, %16, %cst_16 {dimension_numbers = #tpu.dot_dimension_numbers<[1], [0], [0], [1], [0, 0, 1, 1], [], []>} : vector<64x32xbf16>, vector<32x128xbf16>, vector<64x128xf32> -> vector<64x128xf32>
    %18 = arith.addf %12, %17 : vector<64x128xf32>
    %c0_17 = arith.constant 0 : index
    %c1_18 = arith.constant 1 : index
    %c1_19 = arith.constant 1 : index
    %c0_20 = arith.constant 0 : index
    %19 = vector.load %arg1[%c0_17, %c1_18, %c1_19, %c0_20] : memref<1x9x9x32xbf16, #tpu.memory_space<vmem>>, vector<1x8x8x32xbf16>
    %20 = vector.shape_cast %19 : vector<1x8x8x32xbf16> to vector<8x8x32xbf16>
    %21 = vector.shape_cast %20 : vector<8x8x32xbf16> to vector<64x32xbf16>
    %c96 = arith.constant 96 : index
    %c0_21 = arith.constant 0 : index
    %22 = vector.load %arg2[%c96, %c0_21] : memref<128x128xbf16, #tpu.memory_space<vmem>>, vector<32x128xbf16>
    %cst_22 = arith.constant dense<0.000000e+00> : vector<64x128xf32>
    %23 = tpu.matmul %21, %22, %cst_22 {dimension_numbers = #tpu.dot_dimension_numbers<[1], [0], [0], [1], [0, 0, 1, 1], [], []>} : vector<64x32xbf16>, vector<32x128xbf16>, vector<64x128xf32> -> vector<64x128xf32>
    %24 = arith.addf %18, %23 : vector<64x128xf32>
    %cst_23 = arith.constant 0.000000e+00 : f32
    %25 = vector.broadcast %cst_23 : f32 to vector<64x128xf32>
    %26 = arith.maximumf %24, %25 : vector<64x128xf32>
    %27 = arith.truncf %26 : vector<64x128xf32> to vector<64x128xbf16>
    %c0_24 = arith.constant 0 : index
    %c0_25 = arith.constant 0 : index
    %c0_26 = arith.constant 0 : index
    %28 = vector.load %arg3[%c0_24, %c0_25, %c0_26] : memref<1x64x128xbf16, #tpu.memory_space<vmem>>, vector<1x64x128xbf16>
    %29 = vector.shape_cast %28 : vector<1x64x128xbf16> to vector<64x128xbf16>
    %30 = vector.shape_cast %27 : vector<64x128xbf16> to vector<1x64x128xbf16>
    tpu.vector_store %arg3[%c0_24, %c0_25, %c0_26], %30 {strides = array<i32>} : memref<1x64x128xbf16, #tpu.memory_space<vmem>>, vector<1x64x128xbf16>,
    return
  }
  func.func @transform_0(%arg0: i32) -> (i32, i32, i32, i32) {
    %c0_i32 = arith.constant 0 : i32
    %c0_i32_0 = arith.constant 0 : i32
    %c0_i32_1 = arith.constant 0 : i32
    %c0_i32_2 = arith.constant 0 : i32
    return %arg0, %c0_i32, %c0_i32_0, %c0_i32_1 : i32, i32, i32, i32
  }
  func.func @transform_1(%arg0: i32) -> (i32, i32) {
    %c0_i32 = arith.constant 0 : i32
    %c0_i32_0 = arith.constant 0 : i32
    %c0_i32_1 = arith.constant 0 : i32
    return %c0_i32, %c0_i32_0 : i32, i32
  }
  func.func @transform_2(%arg0: i32) -> (i32, i32, i32) {
    %c0_i32 = arith.constant 0 : i32
    %c0_i32_0 = arith.constant 0 : i32
    %c0_i32_1 = arith.constant 0 : i32
    return %arg0, %c0_i32, %c0_i32_0 : i32, i32, i32
  }
}

</mosaic_0001>

<llo_original>
// kernel: _lambda_.1
$region0: #{_lambda_.1}
  #allocation0 [shape = 'u32[]', space=smem, size = 0x4, offset = 0x4, fixed_abs, tag = 'smem constant byte address 0x4 - core index']
  #allocation1 [shape = 'u32[72,128]{1,0:T(1,128)}', space=vmem, size = 0x9000, scoped, tag = 'internal scratch']
  %s0 = inlined_call_operand.vmem [shape: bf16[2,9,9,32], index: 0, kind: input, shape index: {}]
  %s1 = inlined_call_operand.vmem [shape: bf16[128,128], index: 1, kind: input, shape index: {}]
  %s2 = inlined_call_operand.hbm [shape: bf16[2,64,128], index: 2, kind: output, shape index: {}]
  %s3 = sld [smem:[#allocation0]]
  $region41: #{_lambda_.1} parent=0
    _
  %s5 = ssub.s32 1, %s3
  %s6 = scalar_select 0, %s5, %s3
  $region1: #{_lambda_.1} parent=0
    #allocation2 [shape = 'u8[32768]{0}', space=vmem, size = 0x8000, scoped, tag = 'output window, operand 0']
    #allocation3 [shape = 's32[2]{0}', space=sflag, size = 0x8, scoped, tag = 'scoped memory for _lambda_.1']
    %7 = vsyncpa [#allocation3], 0
    %s8 = scalar_lea.sflag [#allocation3], 1
    %9 = vsyncpa %s8, 0
    loop: start=0, step=1, limit=4
    $region2: #{_lambda_.1} parent=1 // loop_pre_header
      _
    $region3: #{_lambda_.1} parent=1 // loop_header
      %s11 = sphi 0, %s15
      %p12 = scmp.ge.s32.totalorder %s11, 4
      %s21 = sphi 0, %s23
      %s24 = sphi 0, %s21
      %s25 = sphi 0, %s24
      %s41 = sphi 0, %s25
      %s45 = sphi 0, %s45
      %s47 = sphi 0, %s45
      %s48 = sphi 0, %s47
      %s62 = sphi 0, %s48
      %s68 = sphi 0, %s70
      %s71 = sphi 0, %s68
      %s72 = sphi 0, %s71
      %s88 = sphi 0, %s72
    $region4: #{_lambda_.1} parent=1 // loop_header_branch
      %14 = sbr.rel (%p12) target = $region8
    $region5: #{_lambda_.1} parent=1 // loop_body
      %s16 = ssub.s32 %s11, 1
      %s17 = ssub.s32 %s11, 2
      %s18 = sadd.s32 %s11, 1
      %s19 = ssub.s32 %s11, %s18
      %p20 = scmp.eq.s32.totalorder %s19, 0
      %s22 = sadd.s32 %s21, 1
      %s23 = scalar_select %p20, %s21, %s22
      %p26 = pneg %p20
      %p27 = scmp.eq.s32.totalorder %s11, 1
      %p28 = por %p26, %p27
      %p29 = scmp.ne.s32.totalorder %s21, %s24
      %p30 = scmp.eq.s32.totalorder %s11, 0
      %p31 = por %p29, %p30
      %p32 = scmp.ne.s32.totalorder %s21, %s24
      %p33 = scmp.eq.s32.totalorder %s16, 1
      %p34 = por %p32, %p33
      %p35 = scmp.ne.s32.totalorder %s24, %s25
      %p36 = scmp.eq.s32.totalorder %s16, 0
      %p37 = por %p35, %p36
      %p38 = scmp.ne.s32.totalorder %s24, %s25
      %p39 = scmp.eq.s32.totalorder %s17, 1
      %p40 = por %p38, %p39
      %p42 = scmp.ne.s32.totalorder %s25, %s41
      %p43 = scmp.eq.s32.totalorder %s17, 0
      %p44 = por %p42, %p43
      %s46 = sadd.s32 %s45, 1
      %p49 = scmp.eq.s32.totalorder %s11, 1
      %p50 = scmp.ne.s32.totalorder %s45, %s47
      %p51 = scmp.eq.s32.totalorder %s11, 0
      %p52 = por %p50, %p51
      %p53 = scmp.ne.s32.totalorder %s45, %s47
      %p54 = scmp.eq.s32.totalorder %s16, 1
      %p55 = por %p53, %p54
      %p56 = scmp.ne.s32.totalorder %s47, %s48
      %p57 = scmp.eq.s32.totalorder %s16, 0
      %p58 = por %p56, %p57
      %p59 = scmp.ne.s32.totalorder %s47, %s48
      %p60 = scmp.eq.s32.totalorder %s17, 1
      %p61 = por %p59, %p60
      %p63 = scmp.ne.s32.totalorder %s48, %s62
      %p64 = scmp.eq.s32.totalorder %s17, 0
      %p65 = por %p63, %p64
      %s66 = ssub.s32 %s11, %s18
      %p67 = scmp.eq.s32.totalorder %s66, 0
      %s69 = sadd.s32 %s68, 1
      %s70 = scalar_select %p67, %s68, %s69
      %p73 = pneg %p67
      %p74 = scmp.eq.s32.totalorder %s11, 1
      %p75 = por %p73, %p74
      %p76 = scmp.ne.s32.totalorder %s68, %s71
      %p77 = scmp.eq.s32.totalorder %s11, 0
      %p78 = por %p76, %p77
      %p79 = scmp.ne.s32.totalorder %s68, %s71
      %p80 = scmp.eq.s32.totalorder %s16, 1
      %p81 = por %p79, %p80
      %p82 = scmp.ne.s32.totalorder %s71, %s72
      %p83 = scmp.eq.s32.totalorder %s16, 0
      %p84 = por %p82, %p83
      %p85 = scmp.ne.s32.totalorder %s71, %s72
      %p86 = scmp.eq.s32.totalorder %s17, 1
      %p87 = por %p85, %p86
      %p89 = scmp.ne.s32.totalorder %s72, %s88
      %p90 = scmp.eq.s32.totalorder %s17, 0
      %p91 = por %p89, %p90
      %p92 = scmp.le.s32.totalorder 1, %s11
      %p93 = scmp.lt.s32.totalorder %s11, 3
      %p94 = pnand %p92, %p93
      %p95 = pneg %p94
      // Predicated region
      $region9: #{_lambda_.1} parent=5 // pred_check
        _
      $region10: #{_lambda_.1} parent=5 // pred_check_branch
        %97 = sbr.rel (%p94) target = $region12
      $region11: #{_lambda_.1} parent=5 // pred_region
        %s98 = ssub.s32 %s11, 1
        // Predicated region
        $region13: #{_lambda_.1} parent=11 // pred_check
          %p99 = pneg %p58
        $region14: #{_lambda_.1} parent=11 // pred_check_branch
          %101 = sbr.rel (%p99) target = $region16
        $region15: #{_lambda_.1} parent=11 // pred_region
          _
        $region16: #{_lambda_.1} parent=11 // pred_fallthru
          _
      $region12: #{_lambda_.1} parent=5 // pred_fallthru
        _
      %p102 = scmp.lt.s32.totalorder %s11, 2
      // Predicated region
      $region17: #{_lambda_.1} parent=5 // pred_check
        %p103 = pneg %p102
      $region18: #{_lambda_.1} parent=5 // pred_check_branch
        %105 = sbr.rel (%p103) target = $region20
      $region19: #{_lambda_.1} parent=5 // pred_region
        // Predicated region
        $region21: #{_lambda_.1} parent=19 // pred_check
          %p106 = pneg %p31
        $region22: #{_lambda_.1} parent=19 // pred_check_branch
          %108 = sbr.rel (%p106) target = $region24
        $region23: #{_lambda_.1} parent=19 // pred_region
          %p109 = scmp.lt.s32.totalorder %s11, 1
          %s110 = scalar_select %p109, %s11, 1
          %s111 = smul.addr %s110, 18
          %s112 = smul.addr %s111, 4
          %s113 = scalar_lea.vmem %s0, %s112
        $region24: #{_lambda_.1} parent=19 // pred_fallthru
          _
      $region20: #{_lambda_.1} parent=5 // pred_fallthru
        _
      %p114 = scmp.le.s32.totalorder 1, %s11
      %p115 = scmp.lt.s32.totalorder %s11, 3
      %p116 = pnand %p114, %p115
      %p117 = pneg %p116
      // Predicated region
      $region25: #{_lambda_.1} parent=5 // pred_check
        _
      $region26: #{_lambda_.1} parent=5 // pred_check_branch
        %119 = sbr.rel (%p116) target = $region28
      $region27: #{_lambda_.1} parent=5 // pred_region
        %s120 = ssub.s32 %s11, 1
        %p121 = scmp.lt.s32.totalorder %s16, 1
        %s122 = scalar_select %p121, %s16, 1
        %s123 = smul.addr %s122, 18
        %s124 = smul.addr %s123, 4
        %s125 = scalar_lea.vmem %s0, %s124
        %p126 = pneg %p37
        %p127 = pneg %p34
        %p128 = pneg %p58
        %p129 = pneg %p55
        %p130 = pneg %p84
        %p131 = pneg %p81
        %s132 = sand.u32 %s71, 1
        %s133 = scalar_lea.sflag [#allocation3], %s132
        %s134 = sand.u32 %s71, 1
        %s135 = smul.addr %s134, 32
        %s136 = scalar_lea.vmem [#allocation2], %s135
        %p137 = scmp.lt.s32.totalorder %s16, 1
        %s138 = scalar_select %p137, %s16, 1
        %s139 = smul.addr %s138, 18
        %s140 = smul.addr %s139, 4
        %s141 = scalar_lea.vmem %s0, %s140
        %v143 = vld [vmem:[%s141] sm:$0xf]
        %v144 = vld [vmem:[%s141 + $0x8] sm:$0xf]
        %v145 = vld [vmem:[%s141 + $0x10] sm:$0xf]
        %v146 = vld [vmem:[%s141 + $0x18] sm:$0xf]
        %v147 = vld [vmem:[%s141 + $0x20] sm:$0xf]
        %v148 = vld [vmem:[%s141 + $0x28] sm:$0xf]
        %v149 = vld [vmem:[%s141 + $0x30] sm:$0xf]
        %v150 = vld [vmem:[%s141 + $0x38] sm:$0xf]
        %v151 = vld [vmem:[%s1] sm:$0xf]
        %v152 = vld [vmem:[%s1 + $0x4] sm:$0xf]
        %v153 = vld [vmem:[%s1 + $0x8] sm:$0xf]
        %v154 = vld [vmem:[%s1 + $0xc] sm:$0xf]
        %v155 = vld [vmem:[%s141 + $0x4] sm:$0x1]
        %v156 = vld [vmem:[%s141 + $0xc] sm:$0x1]
        %v157 = vld [vmem:[%s141 + $0x14] sm:$0x1]
        %v158 = vld [vmem:[%s141 + $0x1c] sm:$0x1]
        %v159 = vld [vmem:[%s141 + $0x24] sm:$0x1]
        %v160 = vld [vmem:[%s141 + $0x2c] sm:$0x1]
        %v161 = vld [vmem:[%s141 + $0x34] sm:$0x1]
        %v162 = vld [vmem:[%s141 + $0x3c] sm:$0x1]
        %vm163 = vsmask.f32 3328
        %vm164 = vsmask.f32 7440
        %vm165 = vmor %vm163, %vm164
        %v167 = vshrl.u32 %v143, 16
        %v169 = vrot.slane %v167, 4
        %v170 = vshll.u32 %v143, 16
        %v172 = vrot.slane %v170, 5
        %v173 = vor.u32 %v169, %v172
        %v174 = vrot.slane %v173, 4
        %v176 = vshll.u32 %v155, 16
        %v178 = vrot.slane %v176, 5
        %v179 = vsel %vm165, %v174, %v178
        %v181 = vshrl.u32 %v144, 16
        %v183 = vrot.slane %v181, 4
        %v184 = vshll.u32 %v144, 16
        %v186 = vrot.slane %v184, 5
        %v187 = vor.u32 %v183, %v186
        %v188 = vrot.slane %v187, 4
        %v190 = vshll.u32 %v156, 16
        %v192 = vrot.slane %v190, 5
        %v193 = vsel %vm165, %v188, %v192
        %v195 = vshrl.u32 %v145, 16
        %v197 = vrot.slane %v195, 4
        %v198 = vshll.u32 %v145, 16
        %v200 = vrot.slane %v198, 5
        %v201 = vor.u32 %v197, %v200
        %v202 = vrot.slane %v201, 4
        %v204 = vshll.u32 %v157, 16
        %v206 = vrot.slane %v204, 5
        %v207 = vsel %vm165, %v202, %v206
        %v209 = vshrl.u32 %v146, 16
        %v211 = vrot.slane %v209, 4
        %v212 = vshll.u32 %v146, 16
        %v214 = vrot.slane %v212, 5
        %v215 = vor.u32 %v211, %v214
        %v216 = vrot.slane %v215, 4
        %v218 = vshll.u32 %v158, 16
        %v220 = vrot.slane %v218, 5
        %v221 = vsel %vm165, %v216, %v220
        %v223 = vshrl.u32 %v147, 16
        %v225 = vrot.slane %v223, 4
        %v226 = vshll.u32 %v147, 16
        %v228 = vrot.slane %v226, 5
        %v229 = vor.u32 %v225, %v228
        %v230 = vrot.slane %v229, 4
        %v232 = vshll.u32 %v159, 16
        %v234 = vrot.slane %v232, 5
        %v235 = vsel %vm165, %v230, %v234
        %v237 = vshrl.u32 %v148, 16
        %v239 = vrot.slane %v237, 4
        %v240 = vshll.u32 %v148, 16
        %v242 = vrot.slane %v240, 5
        %v243 = vor.u32 %v239, %v242
        %v244 = vrot.slane %v243, 4
        %v246 = vshll.u32 %v160, 16
        %v248 = vrot.slane %v246, 5
        %v249 = vsel %vm165, %v244, %v248
        %v251 = vshrl.u32 %v149, 16
        %v253 = vrot.slane %v251, 4
        %v254 = vshll.u32 %v149, 16
        %v256 = vrot.slane %v254, 5
        %v257 = vor.u32 %v253, %v256
        %v258 = vrot.slane %v257, 4
        %v260 = vshll.u32 %v161, 16
        %v262 = vrot.slane %v260, 5
        %v263 = vsel %vm165, %v258, %v262
        %v265 = vshrl.u32 %v150, 16
        %v267 = vrot.slane %v265, 4
        %v268 = vshll.u32 %v150, 16
        %v270 = vrot.slane %v268, 5
        %v271 = vor.u32 %v267, %v270
        %v272 = vrot.slane %v271, 4
        %v274 = vshll.u32 %v162, 16
        %v276 = vrot.slane %v274, 5
        %v277 = vsel %vm165, %v272, %v276
        %v278 = vld [vmem:[%s1 + $0x10] sm:$0xf]
        %v279 = vld [vmem:[%s1 + $0x14] sm:$0xf]
        %v280 = vld [vmem:[%s1 + $0x18] sm:$0xf]
        %v281 = vld [vmem:[%s1 + $0x1c] sm:$0xf]
        %v282 = vunpack.c.l.b16 %v179
        %v283 = vunpack.c.l.b16 %v193
        %v284 = vunpack.c.l.b16 %v207
        %v285 = vunpack.c.l.b16 %v221
        %v286 = vunpack.c.l.b16 %v235
        %v287 = vunpack.c.l.b16 %v249
        %v288 = vunpack.c.l.b16 %v263
        %v289 = vunpack.c.l.b16 %v277
        %v290 = vpack.c.b16 %v283, %v282
        %v291 = vpack.c.b16 %v285, %v284
        %v292 = vpack.c.b16 %v287, %v286
        %v293 = vpack.c.b16 %v289, %v288
        %v298 = vunpack.c.l.b16 %v278
        %v299 = vunpack.c.l.b16 %v279
        %v300 = vunpack.c.l.b16 %v280
        %v301 = vunpack.c.l.b16 %v281
        %v302 = vpack.c.b16 %v299, %v298
        %v303 = vpack.c.b16 %v301, %v300
        %vm306 = vcmask 261120
        %v308 = vsel %vm306, %v290, 0
        %v311 = vsel %vm306, %v291, 0
        %v314 = vsel %vm306, %v292, 0
        %v317 = vsel %vm306, %v293, 0
        %319 = vmatpush.bf16.msra.mxu0 0
        %320 = vmatpush.bf16.msra.mxu0 0
        %321 = vmatpush.bf16.msra.mxu0 0
        %322 = vmatpush.bf16.msra.mxu0 0
        %323 = vmatpush.bf16.msra.mxu0 0
        %324 = vmatpush.bf16.msra.mxu0 0
        %325 = vmatpush.bf16.msra.mxu0 %v303
        %326 = vmatpush.bf16.msra.mxu0 %v302
        %327 = vmatmul.bf16.gmra.mxu0 %v308
        %v328 = vpop.f32.mrf.mxu0
        %v329 = vadd.f32 0.0, %v328
        %v330 = vpop.f32.mrf.mxu0
        %v331 = vadd.f32 0.0, %v330
        %332 = vmatmul.bf16.gmra.mxu0 %v311
        %v333 = vpop.f32.mrf.mxu0
        %v334 = vadd.f32 0.0, %v333
        %v335 = vpop.f32.mrf.mxu0
        %v336 = vadd.f32 0.0, %v335
        %337 = vmatmul.bf16.gmra.mxu0 %v314
        %v338 = vpop.f32.mrf.mxu0
        %v339 = vadd.f32 0.0, %v338
        %v340 = vpop.f32.mrf.mxu0
        %v341 = vadd.f32 0.0, %v340
        %342 = vmatmul.bf16.gmra.mxu0 %v317
        %v343 = vpop.f32.mrf.mxu0
        %v344 = vadd.f32 0.0, %v343
        %v345 = vpop.f32.mrf.mxu0
        %v346 = vadd.f32 0.0, %v345
        %347 = vdwg.mxu0
        %v356 = vunpack.c.l.b16 %v143
        %v357 = vunpack.c.l.b16 %v144
        %v358 = vunpack.c.l.b16 %v145
        %v359 = vunpack.c.l.b16 %v146
        %v360 = vunpack.c.l.b16 %v147
        %v361 = vunpack.c.l.b16 %v148
        %v362 = vunpack.c.l.b16 %v149
        %v363 = vunpack.c.l.b16 %v150
        %v364 = vpack.c.b16 %v357, %v356
        %v365 = vpack.c.b16 %v359, %v358
        %v366 = vpack.c.b16 %v361, %v360
        %v367 = vpack.c.b16 %v363, %v362
        %v372 = vunpack.c.l.b16 %v151
        %v373 = vunpack.c.l.b16 %v152
        %v374 = vunpack.c.l.b16 %v153
        %v375 = vunpack.c.l.b16 %v154
        %v376 = vpack.c.b16 %v373, %v372
        %v377 = vpack.c.b16 %v375, %v374
        %v381 = vsel %vm306, %v364, 0
        %v384 = vsel %vm306, %v365, 0
        %v387 = vsel %vm306, %v366, 0
        %v390 = vsel %vm306, %v367, 0
        %392 = vmatpush.bf16.msra.mxu0 0
        %393 = vmatpush.bf16.msra.mxu0 0
        %394 = vmatpush.bf16.msra.mxu0 0
        %395 = vmatpush.bf16.msra.mxu0 0
        %396 = vmatpush.bf16.msra.mxu0 0
        %397 = vmatpush.bf16.msra.mxu0 0
        %398 = vmatpush.bf16.msra.mxu0 %v377
        %399 = vmatpush.bf16.msra.mxu0 %v376
        %400 = vmatmul.bf16.gmra.mxu0 %v381
        %v401 = vpop.f32.mrf.mxu0
        %v402 = vadd.f32 %v329, %v401
        %v403 = vpop.f32.mrf.mxu0
        %v404 = vadd.f32 %v331, %v403
        %405 = vmatmul.bf16.gmra.mxu0 %v384
        %v406 = vpop.f32.mrf.mxu0
        %v407 = vadd.f32 %v334, %v406
        %v408 = vpop.f32.mrf.mxu0
        %v409 = vadd.f32 %v336, %v408
        %410 = vmatmul.bf16.gmra.mxu0 %v387
        %v411 = vpop.f32.mrf.mxu0
        %v412 = vadd.f32 %v339, %v411
        %v413 = vpop.f32.mrf.mxu0
        %v414 = vadd.f32 %v341, %v413
        %415 = vmatmul.bf16.gmra.mxu0 %v390
        %v416 = vpop.f32.mrf.mxu0
        %v417 = vadd.f32 %v344, %v416
        %v418 = vpop.f32.mrf.mxu0
        %v419 = vadd.f32 %v346, %v418
        %420 = vdwg.mxu0
        %s421 = scalar_lea.vmem %s141, 8
        %v422 = vld [vmem:[%s421] sm:$0xf]
        %v423 = vld [vmem:[%s421 + $0x8] sm:$0xf]
        %v424 = vld [vmem:[%s421 + $0x10] sm:$0xf]
        %v425 = vld [vmem:[%s421 + $0x18] sm:$0xf]
        %v426 = vld [vmem:[%s421 + $0x20] sm:$0xf]
        %v427 = vld [vmem:[%s421 + $0x28] sm:$0xf]
        %v428 = vld [vmem:[%s421 + $0x30] sm:$0xf]
        %v429 = vld [vmem:[%s421 + $0x38] sm:$0xf]
        %v430 = vld [vmem:[%s1 + $0x20] sm:$0xf]
        %v431 = vld [vmem:[%s1 + $0x24] sm:$0xf]
        %v432 = vld [vmem:[%s1 + $0x28] sm:$0xf]
        %v433 = vld [vmem:[%s1 + $0x2c] sm:$0xf]
        %v442 = vunpack.c.l.b16 %v422
        %v443 = vunpack.c.l.b16 %v423
        %v444 = vunpack.c.l.b16 %v424
        %v445 = vunpack.c.l.b16 %v425
        %v446 = vunpack.c.l.b16 %v426
        %v447 = vunpack.c.l.b16 %v427
        %v448 = vunpack.c.l.b16 %v428
        %v449 = vunpack.c.l.b16 %v429
        %v450 = vpack.c.b16 %v443, %v442
        %v451 = vpack.c.b16 %v445, %v444
        %v452 = vpack.c.b16 %v447, %v446
        %v453 = vpack.c.b16 %v449, %v448
        %v458 = vunpack.c.l.b16 %v430
        %v459 = vunpack.c.l.b16 %v431
        %v460 = vunpack.c.l.b16 %v432
        %v461 = vunpack.c.l.b16 %v433
        %v462 = vpack.c.b16 %v459, %v458
        %v463 = vpack.c.b16 %v461, %v460
        %v467 = vsel %vm306, %v450, 0
        %v470 = vsel %vm306, %v451, 0
        %v473 = vsel %vm306, %v452, 0
        %v476 = vsel %vm306, %v453, 0
        %478 = vmatpush.bf16.msra.mxu0 0
        %479 = vmatpush.bf16.msra.mxu0 0
        %480 = vmatpush.bf16.msra.mxu0 0
        %481 = vmatpush.bf16.msra.mxu0 0
        %482 = vmatpush.bf16.msra.mxu0 0
        %483 = vmatpush.bf16.msra.mxu0 0
        %484 = vmatpush.bf16.msra.mxu0 %v463
        %485 = vmatpush.bf16.msra.mxu0 %v462
        %486 = vmatmul.bf16.gmra.mxu0 %v467
        %v487 = vpop.f32.mrf.mxu0
        %v488 = vadd.f32 0.0, %v487
        %v489 = vpop.f32.mrf.mxu0
        %v490 = vadd.f32 0.0, %v489
        %491 = vmatmul.bf16.gmra.mxu0 %v470
        %v492 = vpop.f32.mrf.mxu0
        %v493 = vadd.f32 0.0, %v492
        %v494 = vpop.f32.mrf.mxu0
        %v495 = vadd.f32 0.0, %v494
        %496 = vmatmul.bf16.gmra.mxu0 %v473
        %v497 = vpop.f32.mrf.mxu0
        %v498 = vadd.f32 0.0, %v497
        %v499 = vpop.f32.mrf.mxu0
        %v500 = vadd.f32 0.0, %v499
        %501 = vmatmul.bf16.gmra.mxu0 %v476
        %v502 = vpop.f32.mrf.mxu0
        %v503 = vadd.f32 0.0, %v502
        %v504 = vpop.f32.mrf.mxu0
        %v505 = vadd.f32 0.0, %v504
        %506 = vdwg.mxu0
        %v507 = vadd.f32 %v402, %v488
        %v508 = vadd.f32 %v404, %v490
        %v509 = vadd.f32 %v407, %v493
        %v510 = vadd.f32 %v409, %v495
        %v511 = vadd.f32 %v412, %v498
        %v512 = vadd.f32 %v414, %v500
        %v513 = vadd.f32 %v417, %v503
        %v514 = vadd.f32 %v419, %v505
        %v515 = vld [vmem:[%s421] sm:$0xf]
        %v516 = vld [vmem:[%s421 + $0x4] sm:$0x1]
        %v517 = vld [vmem:[%s421 + $0x8] sm:$0xf]
        %v518 = vld [vmem:[%s421 + $0xc] sm:$0x1]
        %v519 = vld [vmem:[%s421 + $0x10] sm:$0xf]
        %v520 = vld [vmem:[%s421 + $0x14] sm:$0x1]
        %v521 = vld [vmem:[%s421 + $0x18] sm:$0xf]
        %v522 = vld [vmem:[%s421 + $0x1c] sm:$0x1]
        %v523 = vld [vmem:[%s421 + $0x20] sm:$0xf]
        %v524 = vld [vmem:[%s421 + $0x24] sm:$0x1]
        %v525 = vld [vmem:[%s421 + $0x28] sm:$0xf]
        %v526 = vld [vmem:[%s421 + $0x2c] sm:$0x1]
        %v527 = vld [vmem:[%s421 + $0x30] sm:$0xf]
        %v528 = vld [vmem:[%s421 + $0x34] sm:$0x1]
        %v529 = vld [vmem:[%s421 + $0x38] sm:$0xf]
        %v530 = vld [vmem:[%s421 + $0x3c] sm:$0x1]
        %v532 = vshrl.u32 %v515, 16
        %v534 = vrot.slane %v532, 4
        %v535 = vshll.u32 %v515, 16
        %v537 = vrot.slane %v535, 5
        %v538 = vor.u32 %v534, %v537
        %v539 = vrot.slane %v538, 4
        %v541 = vshll.u32 %v516, 16
        %v543 = vrot.slane %v541, 5
        %v544 = vsel %vm165, %v539, %v543
        %v546 = vshrl.u32 %v517, 16
        %v548 = vrot.slane %v546, 4
        %v549 = vshll.u32 %v517, 16
        %v551 = vrot.slane %v549, 5
        %v552 = vor.u32 %v548, %v551
        %v553 = vrot.slane %v552, 4
        %v555 = vshll.u32 %v518, 16
        %v557 = vrot.slane %v555, 5
        %v558 = vsel %vm165, %v553, %v557
        %v560 = vshrl.u32 %v519, 16
        %v562 = vrot.slane %v560, 4
        %v563 = vshll.u32 %v519, 16
        %v565 = vrot.slane %v563, 5
        %v566 = vor.u32 %v562, %v565
        %v567 = vrot.slane %v566, 4
        %v569 = vshll.u32 %v520, 16
        %v571 = vrot.slane %v569, 5
        %v572 = vsel %vm165, %v567, %v571
        %v574 = vshrl.u32 %v521, 16
        %v576 = vrot.slane %v574, 4
        %v577 = vshll.u32 %v521, 16
        %v579 = vrot.slane %v577, 5
        %v580 = vor.u32 %v576, %v579
        %v581 = vrot.slane %v580, 4
        %v583 = vshll.u32 %v522, 16
        %v585 = vrot.slane %v583, 5
        %v586 = vsel %vm165, %v581, %v585
        %v588 = vshrl.u32 %v523, 16
        %v590 = vrot.slane %v588, 4
        %v591 = vshll.u32 %v523, 16
        %v593 = vrot.slane %v591, 5
        %v594 = vor.u32 %v590, %v593
        %v595 = vrot.slane %v594, 4
        %v597 = vshll.u32 %v524, 16
        %v599 = vrot.slane %v597, 5
        %v600 = vsel %vm165, %v595, %v599
        %v602 = vshrl.u32 %v525, 16
        %v604 = vrot.slane %v602, 4
        %v605 = vshll.u32 %v525, 16
        %v607 = vrot.slane %v605, 5
        %v608 = vor.u32 %v604, %v607
        %v609 = vrot.slane %v608, 4
        %v611 = vshll.u32 %v526, 16
        %v613 = vrot.slane %v611, 5
        %v614 = vsel %vm165, %v609, %v613
        %v616 = vshrl.u32 %v527, 16
        %v618 = vrot.slane %v616, 4
        %v619 = vshll.u32 %v527, 16
        %v621 = vrot.slane %v619, 5
        %v622 = vor.u32 %v618, %v621
        %v623 = vrot.slane %v622, 4
        %v625 = vshll.u32 %v528, 16
        %v627 = vrot.slane %v625, 5
        %v628 = vsel %vm165, %v623, %v627
        %v630 = vshrl.u32 %v529, 16
        %v632 = vrot.slane %v630, 4
        %v633 = vshll.u32 %v529, 16
        %v635 = vrot.slane %v633, 5
        %v636 = vor.u32 %v632, %v635
        %v637 = vrot.slane %v636, 4
        %v639 = vshll.u32 %v530, 16
        %v641 = vrot.slane %v639, 5
        %v642 = vsel %vm165, %v637, %v641
        %v643 = vld [vmem:[%s1 + $0x30] sm:$0xf]
        %v644 = vld [vmem:[%s1 + $0x34] sm:$0xf]
        %v645 = vld [vmem:[%s1 + $0x38] sm:$0xf]
        %v646 = vld [vmem:[%s1 + $0x3c] sm:$0xf]
        %v647 = vunpack.c.l.b16 %v544
        %v648 = vunpack.c.l.b16 %v558
        %v649 = vunpack.c.l.b16 %v572
        %v650 = vunpack.c.l.b16 %v586
        %v651 = vunpack.c.l.b16 %v600
        %v652 = vunpack.c.l.b16 %v614
        %v653 = vunpack.c.l.b16 %v628
        %v654 = vunpack.c.l.b16 %v642
        %v655 = vpack.c.b16 %v648, %v647
        %v656 = vpack.c.b16 %v650, %v649
        %v657 = vpack.c.b16 %v652, %v651
        %v658 = vpack.c.b16 %v654, %v653
        %v663 = vunpack.c.l.b16 %v643
        %v664 = vunpack.c.l.b16 %v644
        %v665 = vunpack.c.l.b16 %v645
        %v666 = vunpack.c.l.b16 %v646
        %v667 = vpack.c.b16 %v664, %v663
        %v668 = vpack.c.b16 %v666, %v665
        %v672 = vsel %vm306, %v655, 0
        %v675 = vsel %vm306, %v656, 0
        %v678 = vsel %vm306, %v657, 0
        %v681 = vsel %vm306, %v658, 0
        %683 = vmatpush.bf16.msra.mxu0 0
        %684 = vmatpush.bf16.msra.mxu0 0
        %685 = vmatpush.bf16.msra.mxu0 0
        %686 = vmatpush.bf16.msra.mxu0 0
        %687 = vmatpush.bf16.msra.mxu0 0
        %688 = vmatpush.bf16.msra.mxu0 0
        %689 = vmatpush.bf16.msra.mxu0 %v668
        %690 = vmatpush.bf16.msra.mxu0 %v667
        %691 = vmatmul.bf16.gmra.mxu0 %v672
        %v692 = vpop.f32.mrf.mxu0
        %v693 = vadd.f32 0.0, %v692
        %v694 = vpop.f32.mrf.mxu0
        %v695 = vadd.f32 0.0, %v694
        %696 = vmatmul.bf16.gmra.mxu0 %v675
        %v697 = vpop.f32.mrf.mxu0
        %v698 = vadd.f32 0.0, %v697
        %v699 = vpop.f32.mrf.mxu0
        %v700 = vadd.f32 0.0, %v699
        %701 = vmatmul.bf16.gmra.mxu0 %v678
        %v702 = vpop.f32.mrf.mxu0
        %v703 = vadd.f32 0.0, %v702
        %v704 = vpop.f32.mrf.mxu0
        %v705 = vadd.f32 0.0, %v704
        %706 = vmatmul.bf16.gmra.mxu0 %v681
        %v707 = vpop.f32.mrf.mxu0
        %v708 = vadd.f32 0.0, %v707
        %v709 = vpop.f32.mrf.mxu0
        %v710 = vadd.f32 0.0, %v709
        %711 = vdwg.mxu0
        %v712 = vadd.f32 %v507, %v693
        %v713 = vadd.f32 %v508, %v695
        %v714 = vadd.f32 %v509, %v698
        %v715 = vadd.f32 %v510, %v700
        %v716 = vadd.f32 %v511, %v703
        %v717 = vadd.f32 %v512, %v705
        %v718 = vadd.f32 %v513, %v708
        %v719 = vadd.f32 %v514, %v710
        %v720 = vmax.f32 %v712, 0.0
        %v721 = vmax.f32 %v713, 0.0
        %v722 = vmax.f32 %v714, 0.0
        %v723 = vmax.f32 %v715, 0.0
        %v724 = vmax.f32 %v716, 0.0
        %v725 = vmax.f32 %v717, 0.0
        %v726 = vmax.f32 %v718, 0.0
        %v727 = vmax.f32 %v719, 0.0
        %v728 = vpack.c.bf16 %v720, %v720
        %v729 = vpack.c.bf16 %v721, %v721
        %v730 = vpack.c.bf16 %v722, %v722
        %v731 = vpack.c.bf16 %v723, %v723
        %v732 = vpack.c.bf16 %v724, %v724
        %v733 = vpack.c.bf16 %v725, %v725
        %v734 = vpack.c.bf16 %v726, %v726
        %v735 = vpack.c.bf16 %v727, %v727
        %736 = vst [vmem:[%s136] sm:$0xf] %v728
        %737 = vst [vmem:[%s136 + $0x4] sm:$0xf] %v729
        %738 = vst [vmem:[%s136 + $0x8] sm:$0xf] %v730
        %739 = vst [vmem:[%s136 + $0xc] sm:$0xf] %v731
        %740 = vst [vmem:[%s136 + $0x10] sm:$0xf] %v732
        %741 = vst [vmem:[%s136 + $0x14] sm:$0xf] %v733
        %742 = vst [vmem:[%s136 + $0x18] sm:$0xf] %v734
        %743 = vst [vmem:[%s136 + $0x1c] sm:$0xf] %v735
        %s744 = sand.u32 %s71, 1
        %s745 = scalar_lea.sflag [#allocation3], %s744
        %s746 = sand.u32 %s71, 1
        %s747 = smul.addr %s746, 32
        %s748 = scalar_lea.vmem [#allocation2], %s747
        // Predicated region
        $region29: #{_lambda_.1} parent=27 // pred_check
          %p749 = pneg %p81
        $region30: #{_lambda_.1} parent=27 // pred_check_branch
          %751 = sbr.rel (%p749) target = $region32
        $region31: #{_lambda_.1} parent=27 // pred_region
          %753 = vsyncadd %s745, 0
          %s754 = smul.addr %s16, 8
          %s755 = smul.addr %s754, 4
          %s756 = scalar_lea.hbm %s2, %s755
          %s757 = sshll.u32 %s748, 4
          %s758 = int_to_ptr.vmem [resolvable:$true] %s757
          %s759 = sshll.u32 %s756, 4
          %s760 = int_to_ptr.hbm [resolvable:$true] %s759
          %765 = dma.vmem_to_hbm [thread:$0]  %s758, 512, %s760, %s745, 64, 64, 4
        $region32: #{_lambda_.1} parent=27 // pred_fallthru
          _
      $region28: #{_lambda_.1} parent=5 // pred_fallthru
        _
      %p766 = scmp.le.s32.totalorder 2, %s11
      // Predicated region
      $region33: #{_lambda_.1} parent=5 // pred_check
        %p767 = pneg %p766
      $region34: #{_lambda_.1} parent=5 // pred_check_branch
        %769 = sbr.rel (%p767) target = $region36
      $region35: #{_lambda_.1} parent=5 // pred_region
        %s770 = ssub.s32 %s11, 2
        // Predicated region
        $region37: #{_lambda_.1} parent=35 // pred_check
          %p771 = pneg %p87
        $region38: #{_lambda_.1} parent=35 // pred_check_branch
          %773 = sbr.rel (%p771) target = $region40
        $region39: #{_lambda_.1} parent=35 // pred_region
          %s774 = sand.u32 %s72, 1
          %s775 = scalar_lea.sflag [#allocation3], %s774
          %s776 = sand.u32 %s72, 1
          %s777 = smul.addr %s776, 32
          %s778 = scalar_lea.vmem [#allocation2], %s777
          %780 = dma.done %s775, 512
        $region40: #{_lambda_.1} parent=35 // pred_fallthru
          _
      $region36: #{_lambda_.1} parent=5 // pred_fallthru
        _
    $region6: #{_lambda_.1} parent=1 // loop_footer
      %s15 = sadd.s32 1, %s11
    $region7: #{_lambda_.1} parent=1 // loop_footer_branch
      %10 = sbr.rel target = $region3
    $region8: #{_lambda_.1} parent=1 // loop_exit
      _
    %781 = vsyncpa [#allocation3], 1
    %s782 = scalar_lea.sflag [#allocation3], 1
    %783 = vsyncpa %s782, 1

</llo_original>
